<compile_context>
chip_gen: v5e
topology: v5e:2x2
jax: 0.10.0
libtpu: 0.0.40
codegen_flags: <defaults>
</compile_context>

<pallas_src>
import functools

import jax
import jax.numpy as jnp
from jax.experimental import pallas as pl
from jax.experimental.pallas import tpu as pltpu


def _gcn_kernel(x_ref, adj_ref, wt_ref, wbt_ref, o_ref, *, matmul_dtype):
    # x_ref:   (TB, L, Dp)  batch-block of inputs (Dp = D padded to 128-multiple)
    # adj_ref: (TB, L, L)   batch-block of adjacency
    # wt_ref:  (Dp, Dp)     W transposed (grid-invariant)
    # wbt_ref: (L, 1)       Wb transposed == eye(L) @ Wb.T (grid-invariant)
    # o_ref:   (TB, L, Dp)
    TB, L, Dp = x_ref.shape

    # ---- w_i = x @ W.T : fold (TB, L) into the MXU M dimension -------------
    x2d = x_ref[...].reshape(TB * L, Dp)
    w_i = jnp.dot(
        x2d.astype(matmul_dtype),
        wt_ref[...].astype(matmul_dtype),
        preferred_element_type=jnp.float32,
    ).reshape(TB, L, Dp)

    # ---- normalized neighborhood aggregation --------------------------------
    adj = adj_ref[...]                                            # f32, 0/1 values
    adj_sum = jnp.sum(adj, axis=-1, keepdims=True) + 1.0          # (TB, L, 1), f32
    # Exact reciprocal keeps the 1e-5 check; set approx=True in production (EUP slot).
    inv_deg = pl.reciprocal(adj_sum, approx=False)

    adj_w_i = jnp.einsum(
        "blk,bkd->bld",
        adj.astype(matmul_dtype),
        w_i.astype(matmul_dtype),
        preferred_element_type=jnp.float32,
    )                                                             # (TB, L, Dp), f32

    # ---- bias + relu (all elementwise math stays f32: v5e has no bf16 VPU) --
    bais = wbt_ref[...]                                           # (L, 1) broadcasts
    o_ref[...] = jnp.maximum(adj_w_i * inv_deg + bais, 0.0).astype(o_ref.dtype)


def gcn_forward(input_, adj, w_weight, wb_weight, *,
                matmul_dtype=jnp.float32, batch_block=None):
    """Pallas GCN forward.

    input_:    [B, L, D] float32
    adj:       [B, L, L] float32
    w_weight:  [D, D]  PyTorch Linear weight (out, in)
    wb_weight: [1, L]  PyTorch Linear(max_length, 1) weight
    matmul_dtype: dtype fed to the MXU (jnp.bfloat16 recommended on v6e/v7x)
    """
    B, L, D = input_.shape

    # --- wrapper-side layout plumbing (free relative to the kernel) ----------
    # Lane-dense feature dim: pad D up to a multiple of 128.
    Dp = pl.cdiv(D, 128) * 128
    w_t = jnp.transpose(w_weight)                 # (D, D): w_i = x @ w_t
    x_p = input_
    if Dp != D:
        x_p = jnp.pad(x_p, ((0, 0), (0, 0), (0, Dp - D)))
        w_t = jnp.pad(w_t, ((0, Dp - D), (0, Dp - D)))
    wb_t = jnp.transpose(wb_weight)               # (L, 1) == eye(L) @ Wb.T

    # Batch-blocking: aim for TB*L ~ 128 rows per first-matmul call.
    if batch_block is None:
        batch_block = max(1, min(B, pl.cdiv(128, L)))
    TB = batch_block
    Bp = pl.cdiv(B, TB) * TB
    adj_p = adj
    if Bp != B:
        x_p = jnp.pad(x_p, ((0, Bp - B), (0, 0), (0, 0)))
        adj_p = jnp.pad(adj_p, ((0, Bp - B), (0, 0), (0, 0)))

    kernel = functools.partial(_gcn_kernel, matmul_dtype=matmul_dtype)

    out = pl.pallas_call(
        kernel,
        out_shape=jax.ShapeDtypeStruct((Bp, L, Dp), jnp.float32),
        grid_spec=pltpu.PrefetchScalarGridSpec(
            num_scalar_prefetch=0,
            grid=(Bp // TB,),
            in_specs=[
                pl.BlockSpec((TB, L, Dp), lambda b: (b, 0, 0)),  # input_ block
                pl.BlockSpec((TB, L, L), lambda b: (b, 0, 0)),   # adj block
                pl.BlockSpec((Dp, Dp), lambda b: (0, 0)),        # W^T (invariant)
                pl.BlockSpec((L, 1), lambda b: (0, 0)),          # Wb^T (invariant)
            ],
            out_specs=pl.BlockSpec((TB, L, Dp), lambda b: (b, 0, 0)),
        ),
        compiler_params=pltpu.CompilerParams(
            dimension_semantics=("parallel",),   # batch-block axis -> megacore shard
        ),
    )(x_p, adj_p, w_t, wb_t)

    return out[:B, :, :D]


def gcn_reference(input_, adj, w_weight, wb_weight):
    """Pure-JAX reference mirroring the PyTorch forward (dropout = identity)."""
    w_i = jnp.einsum("bld,ed->ble", input_, w_weight)          # x @ W.T
    adj_sum = jnp.sum(adj, axis=-1, keepdims=True) + 1.0
    adj_w_i = jnp.einsum("blk,bkd->bld", adj, w_i) / adj_sum
    eye = jnp.eye(input_.shape[1], dtype=jnp.float32)
    bais = eye @ wb_weight.T                                   # (L, 1)
    return jax.nn.relu(adj_w_i + bais)


if __name__ == "__main__":
    # Small shapes consistent with the module: batch=2, max_length=8, bgcn_dim=32
    B, L, D = 2, 8, 32

    key = jax.random.PRNGKey(0)
    k1, k2, k3, k4 = jax.random.split(key, 4)

    input_ = jax.random.normal(k1, (B, L, D), dtype=jnp.float32)
    adj = (jax.random.uniform(k2, (B, L, L)) > 0.5).astype(jnp.float32)

    # PyTorch Linear-style weights: [out, in]
    w_weight = jax.random.normal(k3, (D, D), dtype=jnp.float32) * (1.0 / jnp.sqrt(D))
    wb_weight = jax.random.normal(k4, (1, L), dtype=jnp.float32) * (1.0 / jnp.sqrt(L))

    ref = gcn_reference(input_, adj, w_weight, wb_weight)

    # f32 path (exact): must match the reference tightly.
    out = gcn_forward(input_, adj, w_weight, wb_weight)
    out = jax.block_until_ready(out)
    assert out.shape == (B, L, D)
    assert jnp.allclose(out, ref, atol=1e-5, rtol=1e-5), "f32 mismatch vs reference"

    # bf16-MXU path (v6e/v7x optimization): looser tolerance, f32 accumulation.
    out_bf16 = gcn_forward(input_, adj, w_weight, wb_weight,
                           matmul_dtype=jnp.bfloat16)
    out_bf16 = jax.block_until_ready(out_bf16)
    assert jnp.allclose(out_bf16, ref, atol=5e-2, rtol=5e-2), "bf16 mismatch vs reference"

    print("KERNEL_OK")
</pallas_src>

<mosaic_0001>
module attributes {stable_mosaic.version = 11 : i64} {
  func.func @_gcn_kernel(%arg0: i32, %arg1: memref<2x8x128xf32, #tpu.memory_space<vmem>>, %arg2: memref<2x8x8xf32, #tpu.memory_space<vmem>>, %arg3: memref<128x128xf32, #tpu.memory_space<vmem>>, %arg4: memref<8x1xf32, #tpu.memory_space<vmem>>, %arg5: memref<2x8x128xf32, #tpu.memory_space<vmem>>) attributes {dimension_semantics = [#tpu.dimension_semantics<parallel>], iteration_bounds = array<i64: 1>, scalar_prefetch = 0 : i64, scratch_operands = 0 : i64, tpu.core_type = #tpu.core_type<tc>, window_params = [{transform_indices = @transform_0, window_bounds = array<i64: 2, 8, 128>}, {transform_indices = @transform_1, window_bounds = array<i64: 2, 8, 8>}, {pipeline_mode = #tpu.pipeline_mode<synchronous>, transform_indices = @transform_2, window_bounds = array<i64: 128, 128>}, {pipeline_mode = #tpu.pipeline_mode<synchronous>, transform_indices = @transform_3, window_bounds = array<i64: 8, 1>}, {transform_indices = @transform_4, window_bounds = array<i64: 2, 8, 128>}]} {
    %c0 = arith.constant 0 : index
    %c0_0 = arith.constant 0 : index
    %c0_1 = arith.constant 0 : index
    %0 = vector.load %arg1[%c0, %c0_0, %c0_1] : memref<2x8x128xf32, #tpu.memory_space<vmem>>, vector<2x8x128xf32>
    %1 = vector.shape_cast %0 : vector<2x8x128xf32> to vector<16x128xf32>
    %c0_2 = arith.constant 0 : index
    %c0_3 = arith.constant 0 : index
    %2 = vector.load %arg3[%c0_2, %c0_3] : memref<128x128xf32, #tpu.memory_space<vmem>>, vector<128x128xf32>
    %cst = arith.constant dense<0.000000e+00> : vector<16x128xf32>
    %3 = tpu.matmul %1, %2, %cst {dimension_numbers = #tpu.dot_dimension_numbers<[1], [0], [0], [1], [0, 0, 1, 1], [], []>} : vector<16x128xf32>, vector<128x128xf32>, vector<16x128xf32> -> vector<16x128xf32>
    %4 = vector.shape_cast %3 : vector<16x128xf32> to vector<2x8x128xf32>
    %c0_4 = arith.constant 0 : index
    %c0_5 = arith.constant 0 : index
    %c0_6 = arith.constant 0 : index
    %5 = vector.load %arg2[%c0_4, %c0_5, %c0_6] : memref<2x8x8xf32, #tpu.memory_space<vmem>>, vector<2x8x8xf32>
    %cst_7 = arith.constant dense<0.000000e+00> : vector<2x8xf32>
    %6 = vector.multi_reduction <add>, %5, %cst_7 [2] : vector<2x8x8xf32> to vector<2x8xf32>
    %7 = vector.shape_cast %6 : vector<2x8xf32> to vector<2x8x1xf32>
    %cst_8 = arith.constant 1.000000e+00 : f32
    %8 = vector.broadcast %cst_8 : f32 to vector<2x8x1xf32>
    %9 = arith.addf %7, %8 : vector<2x8x1xf32>
    %10 = tpu.reciprocal %9 : vector<2x8x1xf32> -> vector<2x8x1xf32>
    "tpu.trace_start"() <{level = 10 : i32, message = "blk,bkd->bld"}> : () -> ()
    %cst_9 = arith.constant dense<0.000000e+00> : vector<2x8x128xf32>
    %11 = tpu.matmul %5, %4, %cst_9 {dimension_numbers = #tpu.dot_dimension_numbers<[2], [1], [1], [2], [0, 0, 0, 1, 1, 2], [0], [0]>} : vector<2x8x8xf32>, vector<2x8x128xf32>, vector<2x8x128xf32> -> vector<2x8x128xf32>
    "tpu.trace_stop"() : () -> ()
    %c0_10 = arith.constant 0 : index
    %c0_11 = arith.constant 0 : index
    %12 = vector.load %arg4[%c0_10, %c0_11] : memref<8x1xf32, #tpu.memory_space<vmem>>, vector<8x1xf32>
    %13 = vector.broadcast %10 : vector<2x8x1xf32> to vector<2x8x128xf32>
    %14 = arith.mulf %11, %13 : vector<2x8x128xf32>
    %15 = vector.shape_cast %12 : vector<8x1xf32> to vector<1x8x1xf32>
    %16 = vector.broadcast %15 : vector<1x8x1xf32> to vector<2x8x128xf32>
    %17 = arith.addf %14, %16 : vector<2x8x128xf32>
    %cst_12 = arith.constant 0.000000e+00 : f32
    %18 = vector.broadcast %cst_12 : f32 to vector<2x8x128xf32>
    %19 = arith.maximumf %17, %18 : vector<2x8x128xf32>
    %c0_13 = arith.constant 0 : index
    %c0_14 = arith.constant 0 : index
    %c0_15 = arith.constant 0 : index
    %20 = vector.load %arg5[%c0_13, %c0_14, %c0_15] : memref<2x8x128xf32, #tpu.memory_space<vmem>>, vector<2x8x128xf32>
    tpu.vector_store %arg5[%c0_13, %c0_14, %c0_15], %19 {strides = array<i32>} : memref<2x8x128xf32, #tpu.memory_space<vmem>>, vector<2x8x128xf32>,
    return
  }
  func.func @transform_0(%arg0: i32) -> (i32, i32, i32) {
    %c0_i32 = arith.constant 0 : i32
    %c0_i32_0 = arith.constant 0 : i32
    %c0_i32_1 = arith.constant 0 : i32
    return %arg0, %c0_i32, %c0_i32_0 : i32, i32, i32
  }
  func.func @transform_1(%arg0: i32) -> (i32, i32, i32) {
    %c0_i32 = arith.constant 0 : i32
    %c0_i32_0 = arith.constant 0 : i32
    %c0_i32_1 = arith.constant 0 : i32
    return %arg0, %c0_i32, %c0_i32_0 : i32, i32, i32
  }
  func.func @transform_2(%arg0: i32) -> (i32, i32) {
    %c0_i32 = arith.constant 0 : i32
    %c0_i32_0 = arith.constant 0 : i32
    %c0_i32_1 = arith.constant 0 : i32
    return %c0_i32, %c0_i32_0 : i32, i32
  }
  func.func @transform_3(%arg0: i32) -> (i32, i32) {
    %c0_i32 = arith.constant 0 : i32
    %c0_i32_0 = arith.constant 0 : i32
    %c0_i32_1 = arith.constant 0 : i32
    return %c0_i32, %c0_i32_0 : i32, i32
  }
  func.func @transform_4(%arg0: i32) -> (i32, i32, i32) {
    %c0_i32 = arith.constant 0 : i32
    %c0_i32_0 = arith.constant 0 : i32
    %c0_i32_1 = arith.constant 0 : i32
    return %arg0, %c0_i32, %c0_i32_0 : i32, i32, i32
  }
}

</mosaic_0001>

<llo_original>
// kernel: tpu_custom_call.1
$region0: #{tpu_custom_call.1}
  #allocation0 [shape = 'u32[]', space=smem, size = 0x4, offset = 0x4, fixed_abs, tag = 'smem constant byte address 0x4 - core index']
  #allocation1 [shape = 'u32[72,128]{1,0:T(1,128)}', space=vmem, size = 0x9000, scoped, tag = 'internal scratch']
  %s0 = inlined_call_operand.hbm [shape: f32[2,8,128], index: 0, kind: input, shape index: {}]
  %s1 = inlined_call_operand.hbm [shape: f32[2,8,8], index: 1, kind: input, shape index: {}]
  %s2 = inlined_call_operand.hbm [shape: f32[128,128], index: 2, kind: input, shape index: {}]
  %s3 = inlined_call_operand.vmem [shape: f32[8,1], index: 3, kind: input, shape index: {}]
  %s4 = inlined_call_operand.hbm [shape: f32[2,8,128], index: 4, kind: output, shape index: {}]
  %s5 = sld [smem:[#allocation0]]
  $region38: #{tpu_custom_call.1} parent=0
    _
  %s7 = ssub.s32 1, %s5
  %s8 = scalar_select 0, %s7, %s5
  $region1: #{tpu_custom_call.1} parent=0
    #allocation2 [shape = 'u8[8192]{0}', space=vmem, size = 0x2000, scoped, tag = 'input window, operand 0, single buffered']
    #allocation3 [shape = 's32[1]{0}', space=sflag, size = 0x4, scoped, tag = 'scoped memory for tpu_custom_call.1']
    #allocation4 [shape = 's32[1]{0}', space=sflag, size = 0x4, scoped, tag = 'scoped memory for tpu_custom_call.1']
    #allocation5 [shape = 'u8[8192]{0}', space=vmem, size = 0x2000, scoped, tag = 'input window, operand 1, single buffered']
    #allocation6 [shape = 's32[1]{0}', space=sflag, size = 0x4, scoped, tag = 'scoped memory for tpu_custom_call.1']
    #allocation7 [shape = 'u8[65536]{0}', space=vmem, size = 0x10000, scoped, tag = 'input window, operand 2, single buffered']
    #allocation8 [shape = 'u8[8192]{0}', space=vmem, size = 0x2000, scoped, tag = 'output window, operand 0, single buffered']
    %9 = vsyncpa [#allocation3], 0
    %10 = vsyncpa [#allocation6], 0
    %11 = vsyncpa [#allocation4], 0
    // Predicated region
    $region2: #{tpu_custom_call.1} parent=1 // pred_check
      _
    $region3: #{tpu_custom_call.1} parent=1 // pred_check_branch
      %13 = sbr.rel (0) target = $region5
    $region4: #{tpu_custom_call.1} parent=1 // pred_region
      %15 = vsyncadd [#allocation3], 0
      %s16 = sshll.u32 %s0, 4
      %s17 = int_to_ptr.hbm [resolvable:$true] %s16
      %s18 = sshll.u32 [#allocation2], 4
      %s19 = int_to_ptr.vmem [resolvable:$true] %s18
      %24 = dma.hbm_to_vmem [thread:$0]  %s17, 256, %s19, [#allocation3], 128, 128, 8
    $region5: #{tpu_custom_call.1} parent=1 // pred_fallthru
      _
    // Predicated region
    $region6: #{tpu_custom_call.1} parent=1 // pred_check
      _
    $region7: #{tpu_custom_call.1} parent=1 // pred_check_branch
      %26 = sbr.rel (0) target = $region9
    $region8: #{tpu_custom_call.1} parent=1 // pred_region
      %28 = vsyncadd [#allocation6], 0
      %s29 = sshll.u32 %s1, 4
      %s30 = int_to_ptr.hbm [resolvable:$true] %s29
      %s31 = sshll.u32 [#allocation5], 4
      %s32 = int_to_ptr.vmem [resolvable:$true] %s31
      %37 = dma.hbm_to_vmem [thread:$0]  %s30, 256, %s32, [#allocation6], 128, 128, 8
    $region9: #{tpu_custom_call.1} parent=1 // pred_fallthru
      _
    // Predicated region
    $region10: #{tpu_custom_call.1} parent=1 // pred_check
      _
    $region11: #{tpu_custom_call.1} parent=1 // pred_check_branch
      %39 = sbr.rel (0) target = $region13
    $region12: #{tpu_custom_call.1} parent=1 // pred_region
      %41 = vsyncadd [#allocation6], 0
      %s42 = sshll.u32 %s2, 4
      %s43 = int_to_ptr.hbm [resolvable:$true] %s42
      %s44 = sshll.u32 [#allocation7], 4
      %s45 = int_to_ptr.vmem [resolvable:$true] %s44
      %50 = dma.hbm_to_vmem [thread:$0]  %s43, 2048, %s45, [#allocation6], 128, 128, 8
    $region13: #{tpu_custom_call.1} parent=1 // pred_fallthru
      _
    // Predicated region
    $region14: #{tpu_custom_call.1} parent=1 // pred_check
      _
    $region15: #{tpu_custom_call.1} parent=1 // pred_check_branch
      %52 = sbr.rel (0) target = $region17
    $region16: #{tpu_custom_call.1} parent=1 // pred_region
      _
    $region17: #{tpu_custom_call.1} parent=1 // pred_fallthru
      _
    // Predicated region
    $region18: #{tpu_custom_call.1} parent=1 // pred_check
      _
    $region19: #{tpu_custom_call.1} parent=1 // pred_check_branch
      %54 = sbr.rel (0) target = $region21
    $region20: #{tpu_custom_call.1} parent=1 // pred_region
      %56 = dma.done [#allocation3], 256
    $region21: #{tpu_custom_call.1} parent=1 // pred_fallthru
      _
    // Predicated region
    $region22: #{tpu_custom_call.1} parent=1 // pred_check
      _
    $region23: #{tpu_custom_call.1} parent=1 // pred_check_branch
      %58 = sbr.rel (0) target = $region25
    $region24: #{tpu_custom_call.1} parent=1 // pred_region
      %60 = dma.done [#allocation6], 256
    $region25: #{tpu_custom_call.1} parent=1 // pred_fallthru
      _
    // Predicated region
    $region26: #{tpu_custom_call.1} parent=1 // pred_check
      _
    $region27: #{tpu_custom_call.1} parent=1 // pred_check_branch
      %62 = sbr.rel (0) target = $region29
    $region28: #{tpu_custom_call.1} parent=1 // pred_region
      %64 = dma.done [#allocation6], 2048
    $region29: #{tpu_custom_call.1} parent=1 // pred_fallthru
      _
    %v65 = vld [vmem:[#allocation2] sm:$0xff]
    %v66 = vld [vmem:[#allocation2 + $0x8] sm:$0xff]
    %v67 = vld [vmem:[#allocation7] sm:$0xff]
    %v68 = vld [vmem:[#allocation7 + $0x8] sm:$0xff]
    %v69 = vld [vmem:[#allocation7 + $0x10] sm:$0xff]
    %v70 = vld [vmem:[#allocation7 + $0x18] sm:$0xff]
    %v71 = vld [vmem:[#allocation7 + $0x20] sm:$0xff]
    %v72 = vld [vmem:[#allocation7 + $0x28] sm:$0xff]
    %v73 = vld [vmem:[#allocation7 + $0x30] sm:$0xff]
    %v74 = vld [vmem:[#allocation7 + $0x38] sm:$0xff]
    %v75 = vld [vmem:[#allocation7 + $0x40] sm:$0xff]
    %v76 = vld [vmem:[#allocation7 + $0x48] sm:$0xff]
    %v77 = vld [vmem:[#allocation7 + $0x50] sm:$0xff]
    %v78 = vld [vmem:[#allocation7 + $0x58] sm:$0xff]
    %v79 = vld [vmem:[#allocation7 + $0x60] sm:$0xff]
    %v80 = vld [vmem:[#allocation7 + $0x68] sm:$0xff]
    %v81 = vld [vmem:[#allocation7 + $0x70] sm:$0xff]
    %v82 = vld [vmem:[#allocation7 + $0x78] sm:$0xff]
    %83 = vmatpush.msra.mxu0 %v82
    %84 = vmatpush.msra.mxu0 %v81
    %85 = vmatpush.msra.mxu0 %v80
    %86 = vmatpush.msra.mxu0 %v79
    %87 = vmatpush.msra.mxu0 %v78
    %88 = vmatpush.msra.mxu0 %v77
    %89 = vmatpush.msra.mxu0 %v76
    %90 = vmatpush.msra.mxu0 %v75
    %91 = vmatpush.msra.mxu0 %v74
    %92 = vmatpush.msra.mxu0 %v73
    %93 = vmatpush.msra.mxu0 %v72
    %94 = vmatpush.msra.mxu0 %v71
    %95 = vmatpush.msra.mxu0 %v70
    %96 = vmatpush.msra.mxu0 %v69
    %97 = vmatpush.msra.mxu0 %v68
    %98 = vmatpush.msra.mxu0 %v67
    %99 = vmatmul.f32.gmra.mxu0 %v65
    %v100 = vpop.f32.mrf.mxu0
    %v101 = vadd.f32 0.0, %v100
    %102 = vmatmul.f32.gmra.mxu0 %v66
    %v103 = vpop.f32.mrf.mxu0
    %v104 = vadd.f32 0.0, %v103
    %105 = vdwg.mxu0
    %v106 = vld [vmem:[#allocation5] sm:$0xff]
    %v107 = vld [vmem:[#allocation5 + $0x8] sm:$0xff]
    %vm108 = vcmask 64512
    %v109 = vsel %vm108, %v106, 0.0
    %110 = vadd.xlane.f32.xlu0 %v109
    %v111 = vpop.xlane.xlu0 %110
    %v112 = vsel %vm108, %v107, 0.0
    %113 = vadd.xlane.f32.xlu0 %v112
    %v114 = vpop.xlane.xlu0 %113
    %v115 = vadd.f32 %v111, 1.0
    %v116 = vadd.f32 %v114, 1.0
    %v117 = vrcp.pop %v115
    %v118 = vmul.f32 %v115, %v117
    %v119 = vsub.f32 1.0, %v118
    %v120 = vmul.f32 %v117, %v119
    %v121 = vadd.f32 %v117, %v120
    %vm122 = vweird.f32 %v115
    %vm123 = vweird.f32 %v117
    %vm124 = vmor %vm122, %vm123
    %v125 = vsel %vm124, %v117, %v121
    %v126 = vand.u32 2147483647, %v115
    %vm127 = vcmp.eq.f32.partialorder %v126, 8.507059e+37
    %v128 = vand.u32 %v115, 2147483648
    %v129 = vor.u32 1.1754944e-38, %v128
    %v130 = vsel %vm127, %v129, %v125
    %v131 = vrcp.pop %v116
    %v132 = vmul.f32 %v116, %v131
    %v133 = vsub.f32 1.0, %v132
    %v134 = vmul.f32 %v131, %v133
    %v135 = vadd.f32 %v131, %v134
    %vm136 = vweird.f32 %v116
    %vm137 = vweird.f32 %v131
    %vm138 = vmor %vm136, %vm137
    %v139 = vsel %vm138, %v131, %v135
    %v140 = vand.u32 2147483647, %v116
    %vm141 = vcmp.eq.f32.partialorder %v140, 8.507059e+37
    %v142 = vand.u32 %v116, 2147483648
    %v143 = vor.u32 1.1754944e-38, %v142
    %v144 = vsel %vm141, %v143, %v139
    %v146 = vsel %vm108, %v106, 0
    %148 = vmatpush.msra.mxu0 0.0
    %149 = vmatpush.msra.mxu0 0.0
    %150 = vmatpush.msra.mxu0 0.0
    %151 = vmatpush.msra.mxu0 0.0
    %152 = vmatpush.msra.mxu0 0.0
    %153 = vmatpush.msra.mxu0 0.0
    %154 = vmatpush.msra.mxu0 0.0
    %155 = vmatpush.msra.mxu0 0.0
    %156 = vmatpush.msra.mxu0 0.0
    %157 = vmatpush.msra.mxu0 0.0
    %158 = vmatpush.msra.mxu0 0.0
    %159 = vmatpush.msra.mxu0 0.0
    %160 = vmatpush.msra.mxu0 0.0
    %161 = vmatpush.msra.mxu0 0.0
    %162 = vmatpush.msra.mxu0 0.0
    %163 = vmatpush.msra.mxu0 %v101
    %164 = vmatmul.f32.gmra.mxu0 %v146
    %v165 = vpop.f32.mrf.mxu0
    %v166 = vadd.f32 0.0, %v165
    %167 = vdwg.mxu0
    %v169 = vsel %vm108, %v107, 0
    %171 = vmatpush.msra.mxu0 0.0
    %172 = vmatpush.msra.mxu0 0.0
    %173 = vmatpush.msra.mxu0 0.0
    %174 = vmatpush.msra.mxu0 0.0
    %175 = vmatpush.msra.mxu0 0.0
    %176 = vmatpush.msra.mxu0 0.0
    %177 = vmatpush.msra.mxu0 0.0
    %178 = vmatpush.msra.mxu0 0.0
    %179 = vmatpush.msra.mxu0 0.0
    %180 = vmatpush.msra.mxu0 0.0
    %181 = vmatpush.msra.mxu0 0.0
    %182 = vmatpush.msra.mxu0 0.0
    %183 = vmatpush.msra.mxu0 0.0
    %184 = vmatpush.msra.mxu0 0.0
    %185 = vmatpush.msra.mxu0 0.0
    %186 = vmatpush.msra.mxu0 %v104
    %187 = vmatmul.f32.gmra.mxu0 %v169
    %v188 = vpop.f32.mrf.mxu0
    %v189 = vadd.f32 0.0, %v188
    %190 = vdwg.mxu0
    %v191 = vld [vmem:[%s3] sm:$0xff]
    %v192 = vmul.f32 %v166, %v130
    %v193 = vmul.f32 %v189, %v144
    %195 = vset.pattern.permute.xlu0 0
    %196 = vperm.xlu0 %195, %v191
    %v197 = vpop.permute.xlu0 %196
    %v199 = vadd.f32 %v192, %v197
    %v200 = vadd.f32 %v193, %v197
    %v201 = vmax.f32 %v199, 0.0
    %v202 = vmax.f32 %v200, 0.0
    %203 = vst [vmem:[#allocation8] sm:$0xff] %v201
    %204 = vst [vmem:[#allocation8 + $0x8] sm:$0xff] %v202
    // Predicated region
    $region30: #{tpu_custom_call.1} parent=1 // pred_check
      _
    $region31: #{tpu_custom_call.1} parent=1 // pred_check_branch
      %206 = sbr.rel (0) target = $region33
    $region32: #{tpu_custom_call.1} parent=1 // pred_region
      %208 = vsyncadd [#allocation4], 0
      %s209 = sshll.u32 [#allocation8], 4
      %s210 = int_to_ptr.vmem [resolvable:$true] %s209
      %s211 = sshll.u32 %s4, 4
      %s212 = int_to_ptr.hbm [resolvable:$true] %s211
      %217 = dma.vmem_to_hbm [thread:$0]  %s210, 256, %s212, [#allocation4], 128, 128, 8
    $region33: #{tpu_custom_call.1} parent=1 // pred_fallthru
      _
    // Predicated region
    $region34: #{tpu_custom_call.1} parent=1 // pred_check
      _
    $region35: #{tpu_custom_call.1} parent=1 // pred_check_branch
      %219 = sbr.rel (0) target = $region37
    $region36: #{tpu_custom_call.1} parent=1 // pred_region
      %221 = dma.done [#allocation4], 256
    $region37: #{tpu_custom_call.1} parent=1 // pred_fallthru
      _
    %222 = vsyncpa [#allocation3], 1
    %223 = vsyncpa [#allocation6], 1
    %224 = vsyncpa [#allocation4], 1

</llo_original>
